<compile_context>
chip_gen: v5e
topology: v5e:2x2
jax: 0.10.0
libtpu: 0.0.40
codegen_flags: <defaults>
</compile_context>

<pallas_src>
import functools
import math

import jax
import jax.numpy as jnp
from jax.experimental import pallas as pl
from jax.experimental.pallas import tpu as pltpu


def _round_up(x: int, m: int) -> int:
    return -(-x // m) * m


def _cdiv(a: int, b: int) -> int:
    return -(-a // b)


def _vmem_capacity_bytes(default: int = 64 << 20) -> int:
    """Per-TensorCore VMEM capacity (v5e/v6e: 128 MiB, v7x: 64 MiB)."""
    try:
        return int(getattr(pltpu.get_tpu_info(), "vmem_capacity_bytes", default))
    except Exception:
        return default


def _convtr_kernel(*refs, TL, Qmax, Qpad):
    """One time-tile of the transposed conv (channels-last, stride-blocked output).

    refs (Qmax > 0):  x (N,TL,Cin), halo (N,Qpad,Cin), w (Cin,(Qmax+1)*SC),
                      b (1,SC), out (N,TL,SC), acc scratch (N,TL,SC) f32
    refs (Qmax == 0): x, w, b, out

    Blocked output position p = t*TL + j, residue r (full position o = p*stride + r):
        out[n, j, r*C_out + c] = bias[c] + sum_q x[n, p - q, :] @ W[:, c, q*stride + r]
    with q in [0, Qmax].  Rows p - q < t*TL come from the halo block (the last Qmax
    rows before this tile), pre-zeroed in the wrapper for tile 0 / alignment rows.
    """
    if Qmax > 0:
        x_ref, halo_ref, w_ref, b_ref, out_ref, acc_ref = refs
    else:
        x_ref, w_ref, b_ref, out_ref = refs

    N = x_ref.shape[0]
    C_in = x_ref.shape[2]
    SC = out_ref.shape[2]  # stride * C_out_padded (multiple of 128 lanes)

    x2 = x_ref[...].reshape(N * TL, C_in)

    if Qmax == 0:
        y0 = jnp.dot(x2, w_ref[...], preferred_element_type=jnp.float32)
        out_ref[...] = (y0.reshape(N, TL, SC) + b_ref[...]).astype(out_ref.dtype)
        return

    # Tap 0 (no time shift) initializes the f32 accumulator scratch.
    acc_ref[...] = jnp.dot(
        x2, w_ref[:, 0:SC], preferred_element_type=jnp.float32
    ).reshape(N, TL, SC)

    # Halo rows (last Qmax rows before this tile) against taps 1..Qmax, one small dot.
    yh = jnp.dot(
        halo_ref[...].reshape(N * Qpad, C_in), w_ref[:, SC:(Qmax + 1) * SC],
        preferred_element_type=jnp.float32,
    ).reshape(N, Qpad, Qmax * SC)

    # Per-tap-group matmuls accumulated in place (bounded f32 temporaries; the shifted
    # row ranges are static slices -> masked sublane stores, no full-tile copies).
    for q in range(1, Qmax + 1):
        yq = jnp.dot(
            x2, w_ref[:, q * SC:(q + 1) * SC], preferred_element_type=jnp.float32
        ).reshape(N, TL, SC)
        acc_ref[:, q:TL, :] += yq[:, 0:TL - q, :]
        acc_ref[:, 0:q, :] += yh[:, Qpad - q:Qpad, (q - 1) * SC:q * SC]

    # Single lane-dense store; bias folded in; f32 -> out dtype cast at the store.
    out_ref[...] = (acc_ref[...] + b_ref[...]).astype(out_ref.dtype)


def _choose_time_tile(l_needed, N, C_in, SC, Qmax, in_sz, out_sz, budget_bytes):
    """Largest multiple-of-16 time tile whose per-tile VMEM footprint fits the budget."""
    per_row = N * (2 * C_in * in_sz                  # x tile, double-buffered
                   + 2 * SC * out_sz                 # out tile, double-buffered
                   + (SC * 4 if Qmax > 0 else 0)     # f32 accumulator scratch
                   + 2 * SC * 4)                     # per-tap matmul result temporaries
    tl = max(16, (budget_bytes // max(per_row, 1)) // 16 * 16)
    tl = min(tl, 2048)
    tl = min(tl, _round_up(l_needed, 16))
    tl = max(tl, _round_up(max(Qmax, 1), 16))
    return int(tl)


def norm_conv_transpose1d(x, v, g, bias, *, stride, padding,
                          compute_dtype=jnp.bfloat16, out_dtype=None,
                          time_tile=None, channels_last_input=False,
                          channels_last_output=False):
    """Forward of NormConvTranspose1d (weight_norm parametrization, layer norm = identity).

    x: (N, C_in, L_in), or (N, L_in, C_in) if channels_last_input
    v: (C_in, C_out, K); g: (C_in,); bias: (C_out,)
    Returns (N, C_out, L_out) (or (N, L_out, C_out) if channels_last_output),
    with L_out = (L_in - 1)*stride - 2*padding + K.
    """
    out_dtype = compute_dtype if out_dtype is None else out_dtype

    if channels_last_input:
        N, L_in, C_in = x.shape
        x_nlc = x.astype(compute_dtype)
    else:
        N, C_in, L_in = x.shape
        # TODO(synk): upstream layers that already produce channels-last activations
        # should pass channels_last_input=True and skip this extra HBM transpose pass.
        x_nlc = jnp.transpose(x, (0, 2, 1)).astype(compute_dtype)

    C_out, K = v.shape[1], v.shape[2]
    Qmax = (K - 1) // stride                        # extra look-back taps per blocked row
    Qpad = _round_up(Qmax, 16) if Qmax > 0 else 0   # 16 covers bf16 sublane packing
    K_pad = (Qmax + 1) * stride

    # Lane-dense output: pad C_out so stride*C_out_p is a multiple of 128 lanes, making
    # the output store an unmasked vst and the MXU N-dim lane-aligned.  (C_in is left
    # unpadded: Mosaic already lane-pads it inside VMEM and explicit padding would only
    # inflate input HBM bytes.)
    lane = 128
    if (stride * C_out) % lane:
        C_out_p = _round_up(C_out, lane // math.gcd(stride, lane))
    else:
        C_out_p = C_out
    SC = stride * C_out_p

    L_full = (L_in - 1) * stride + K
    L_out = L_full - 2 * padding
    L_needed = L_in + Qmax                          # blocked output positions to produce

    # --- weight_norm reparametrization (dim=0, no epsilon, matches PyTorch) ---
    vnorm = jnp.sqrt(jnp.sum(v * v, axis=(1, 2), keepdims=True))
    w = g.reshape(-1, 1, 1) * v / vnorm                          # (C_in, C_out, K) f32
    w = jnp.pad(w, ((0, 0), (0, C_out_p - C_out), (0, 0)))       # lane padding (zeros)
    w_kc = jnp.transpose(w, (0, 2, 1))                           # (C_in, K, C_out_p)
    w_kc = jnp.pad(w_kc, ((0, 0), (0, K_pad - K), (0, 0)))       # zero taps k >= K
    w_all = w_kc.reshape(C_in, K_pad * C_out_p).astype(compute_dtype)
    b_pad = jnp.pad(bias.astype(jnp.float32), (0, C_out_p - C_out))
    b_tiled = jnp.tile(b_pad, stride).reshape(1, SC)             # residue-major bias row

    in_sz = jnp.dtype(compute_dtype).itemsize
    out_sz = jnp.dtype(out_dtype).itemsize

    # --- generation-aware VMEM budget (v5e/v6e: 128 MiB, v7x: 64 MiB per TC) ---
    vmem_cap = _vmem_capacity_bytes()
    vmem_ceiling = (vmem_cap * 7) // 8              # headroom for compiler scratch
    weight_vmem = 2 * C_in * K_pad * C_out_p * in_sz + 2 * SC * 4  # double-buffered consts
    # TODO(synk): pipeline_mode=pl.Buffered(1) on the constant weight/bias BlockSpecs
    # would drop their second pipeline buffer; left at the default for compatibility.

    if time_tile is None:
        budget = min(vmem_ceiling // 2, 32 << 20,
                     max(vmem_ceiling - weight_vmem - (4 << 20), 4 << 20))
        tl = _choose_time_tile(L_needed, N, C_in, SC, Qmax, in_sz, out_sz, budget)
    else:
        tl = max(_round_up(int(time_tile), 16), _round_up(max(Qmax, 1), 16))
    T = _cdiv(L_needed, tl)
    # v7x has 2 TensorCores; keep the "parallel" time grid at >= 2 steps when the
    # sequence is long enough that both halves stay reasonably sized.
    if time_tile is None and T == 1 and L_needed >= 128:
        tl = _round_up(_cdiv(L_needed, 2), 16)
        T = _cdiv(L_needed, tl)
    L_pad = T * tl

    if L_pad > L_in:
        x_nlc = jnp.pad(x_nlc, ((0, 0), (0, L_pad - L_in), (0, 0)))

    # --- tiny per-tile halo: the last Qmax rows before each tile, pre-zeroed for tile 0
    # and the Qpad-Qmax alignment rows; only Qpad rows are DMA'd per grid step ---
    halo = None
    if Qmax > 0:
        halo = jnp.zeros((T, N, Qpad, C_in), compute_dtype)
        if T > 1:
            idx = (jnp.arange(1, T) * tl)[:, None] + jnp.arange(-Qmax, 0)[None, :]
            gathered = x_nlc[:, idx, :]                        # (N, T-1, Qmax, C_in)
            halo = halo.at[1:, :, Qpad - Qmax:, :].set(
                jnp.transpose(gathered, (1, 0, 2, 3)))

    kernel = functools.partial(_convtr_kernel, TL=tl, Qmax=Qmax, Qpad=Qpad)

    in_specs = [pl.BlockSpec((N, tl, C_in), lambda t: (0, t, 0))]
    args = [x_nlc]
    scratch_shapes = []
    if Qmax > 0:
        in_specs.append(pl.BlockSpec((None, N, Qpad, C_in), lambda t: (t, 0, 0, 0)))
        args.append(halo)
        scratch_shapes.append(pltpu.VMEM((N, tl, SC), jnp.float32))
    in_specs += [pl.BlockSpec((C_in, K_pad * C_out_p), lambda t: (0, 0)),
                 pl.BlockSpec((1, SC), lambda t: (0, 0))]
    args += [w_all, b_tiled]

    need = (2 * N * tl * C_in * in_sz                          # x tile (2 pipeline bufs)
            + (2 * N * Qpad * C_in * in_sz if Qmax > 0 else 0)  # halo (2 bufs)
            + 2 * N * tl * SC * out_sz                          # out tile (2 bufs)
            + weight_vmem                                       # resident weight + bias
            + (N * tl * SC * 4 if Qmax > 0 else 0)              # f32 accumulator scratch
            + 2 * N * tl * SC * 4                               # matmul result temporaries
            + (2 << 20))                                        # headroom
    vmem_limit = int(min(vmem_ceiling, max(2 * need, 32 << 20)))

    flops = 2 * N * L_pad * C_in * K_pad * C_out_p
    bytes_accessed = (x_nlc.size * in_sz
                      + (halo.size * in_sz if Qmax > 0 else 0)
                      + w_all.size * in_sz + b_tiled.size * 4
                      + N * L_pad * SC * out_sz)

    out_blk = pl.pallas_call(
        kernel,
        out_shape=jax.ShapeDtypeStruct((N, L_pad, SC), out_dtype),
        grid=(T,),
        in_specs=in_specs,
        out_specs=pl.BlockSpec((N, tl, SC), lambda t: (0, t, 0)),
        scratch_shapes=scratch_shapes,
        compiler_params=pltpu.CompilerParams(
            dimension_semantics=("parallel",),
            vmem_limit_bytes=vmem_limit),
        cost_estimate=pl.CostEstimate(flops=int(flops), transcendentals=0,
                                      bytes_accessed=int(bytes_accessed)),
    )(*args)

    # Stride-blocked layout -> full time axis is a free reshape; crop the time padding
    # and the lane-padded output channels.
    y_full = out_blk.reshape(N, L_pad * stride, C_out_p)
    y = y_full[:, padding:padding + L_out, :C_out]
    # The module's layer-norm branch is 'no_norm' (identity) under weight_norm.
    if channels_last_output:
        return y                                   # (N, L_out, C_out)
    # TODO(synk): consumers that accept channels-last activations should pass
    # channels_last_output=True and skip this extra HBM transpose pass.
    return jnp.transpose(y, (0, 2, 1))             # (N, C_out, L_out)


def _reference(x, w_norm, bias, stride, padding):
    """PyTorch-semantics ConvTranspose1d reference (pure JAX, per-tap overlap-add)."""
    N, C_in, L_in = x.shape
    _, C_out, K = w_norm.shape
    L_full = (L_in - 1) * stride + K
    z = jnp.einsum("ncl,cok->nokl", x.astype(jnp.float32),
                   w_norm.astype(jnp.float32))            # (N, C_out, K, L_in)
    y = jnp.zeros((N, C_out, L_full), jnp.float32)
    for k in range(K):
        y = y.at[:, :, k:k + (L_in - 1) * stride + 1:stride].add(z[:, :, k, :])
    L_out = L_full - 2 * padding
    return y[:, :, padding:padding + L_out] + bias[None, :, None]


if __name__ == "__main__":
    key = jax.random.PRNGKey(0)
    keys = jax.random.split(key, 12)

    # --- Test 1: EnCodec-style ConvTranspose1d(4, 8, kernel_size=4, stride=2,
    #     padding=1, bias=True), norm='weight_norm'; small shapes. ---
    N, C_in, C_out, L_in = 2, 4, 8, 16
    K, STRIDE, PADDING = 4, 2, 1
    x = jax.random.normal(keys[0], (N, C_in, L_in), jnp.float32)
    v = jax.random.normal(keys[1], (C_in, C_out, K), jnp.float32)
    g = jnp.abs(jax.random.normal(keys[2], (C_in,), jnp.float32)) + 0.5
    bias = jax.random.normal(keys[3], (C_out,), jnp.float32) * 0.1

    vnorm = jnp.sqrt(jnp.sum(v * v, axis=(1, 2), keepdims=True))
    y_ref = _reference(x, g.reshape(-1, 1, 1) * v / vnorm, bias, STRIDE, PADDING)
    L_out = (L_in - 1) * STRIDE - 2 * PADDING + K

    # f32 compute + f32 writeback: tight check of the kernel math.
    y32 = norm_conv_transpose1d(x, v, g, bias, stride=STRIDE, padding=PADDING,
                                compute_dtype=jnp.float32, out_dtype=jnp.float32)
    y32 = jax.block_until_ready(y32)
    assert y32.shape == (N, C_out, L_out), y32.shape
    assert jnp.allclose(y32, y_ref, rtol=1e-3, atol=1e-3), float(
        jnp.max(jnp.abs(y32 - y_ref)))

    # Default path: bf16 compute, f32 accumulation, bf16 writeback.
    ybf = norm_conv_transpose1d(x, v, g, bias, stride=STRIDE, padding=PADDING)
    ybf = jax.block_until_ready(ybf)
    assert ybf.shape == (N, C_out, L_out), ybf.shape
    assert jnp.allclose(ybf.astype(jnp.float32), y_ref, rtol=4e-2, atol=4e-2), float(
        jnp.max(jnp.abs(ybf.astype(jnp.float32) - y_ref)))

    # --- Test 2: multi-tile halo path (T >= 3 tiles, K not a multiple of stride,
    #     Qmax = 2, forced small time tile). ---
    N2, Ci2, Co2, L2 = 2, 16, 8, 40
    K2, S2, P2 = 7, 3, 2
    x2 = jax.random.normal(keys[4], (N2, Ci2, L2), jnp.float32)
    v2 = jax.random.normal(keys[5], (Ci2, Co2, K2), jnp.float32)
    g2 = jnp.abs(jax.random.normal(keys[6], (Ci2,), jnp.float32)) + 0.5
    b2 = jax.random.normal(keys[7], (Co2,), jnp.float32) * 0.1

    vnorm2 = jnp.sqrt(jnp.sum(v2 * v2, axis=(1, 2), keepdims=True))
    y_ref2 = _reference(x2, g2.reshape(-1, 1, 1) * v2 / vnorm2, b2, S2, P2)
    L_out2 = (L2 - 1) * S2 - 2 * P2 + K2

    y2 = norm_conv_transpose1d(x2, v2, g2, b2, stride=S2, padding=P2,
                               compute_dtype=jnp.float32, out_dtype=jnp.float32,
                               time_tile=16)
    y2 = jax.block_until_ready(y2)
    assert y2.shape == (N2, Co2, L_out2), y2.shape
    assert jnp.allclose(y2, y_ref2, rtol=1e-3, atol=1e-3), float(
        jnp.max(jnp.abs(y2 - y_ref2)))

    # --- Test 3: K == stride (Qmax = 0, no halo / no scratch path). ---
    N3, Ci3, Co3, L3 = 2, 4, 8, 16
    K3, S3, P3 = 2, 2, 0
    x3 = jax.random.normal(keys[8], (N3, Ci3, L3), jnp.float32)
    v3 = jax.random.normal(keys[9], (Ci3, Co3, K3), jnp.float32)
    g3 = jnp.abs(jax.random.normal(keys[10], (Ci3,), jnp.float32)) + 0.5
    b3 = jax.random.normal(keys[11], (Co3,), jnp.float32) * 0.1

    vnorm3 = jnp.sqrt(jnp.sum(v3 * v3, axis=(1, 2), keepdims=True))
    y_ref3 = _reference(x3, g3.reshape(-1, 1, 1) * v3 / vnorm3, b3, S3, P3)
    L_out3 = (L3 - 1) * S3 - 2 * P3 + K3

    y3 = norm_conv_transpose1d(x3, v3, g3, b3, stride=S3, padding=P3,
                               compute_dtype=jnp.float32, out_dtype=jnp.float32)
    y3 = jax.block_until_ready(y3)
    assert y3.shape == (N3, Co3, L_out3), y3.shape
    assert jnp.allclose(y3, y_ref3, rtol=1e-3, atol=1e-3), float(
        jnp.max(jnp.abs(y3 - y_ref3)))

    print("KERNEL_OK")
</pallas_src>

<mosaic_0001>
module attributes {stable_mosaic.version = 11 : i64} {
  func.func @_convtr_kernel(%arg0: i32, %arg1: memref<2x32x4xf32, #tpu.memory_space<vmem>>, %arg2: memref<1x2x16x4xf32, #tpu.memory_space<vmem>>, %arg3: memref<4x256xf32, #tpu.memory_space<vmem>>, %arg4: memref<1x128xf32, #tpu.memory_space<vmem>>, %arg5: memref<2x32x128xf32, #tpu.memory_space<vmem>>, %arg6: memref<2x32x128xf32, #tpu.memory_space<vmem>>) attributes {dimension_semantics = [#tpu.dimension_semantics<parallel>], iteration_bounds = array<i64: 1>, scalar_prefetch = 0 : i64, scratch_operands = 1 : i64, tpu.core_type = #tpu.core_type<tc>, window_params = [{transform_indices = @transform_0, window_bounds = array<i64: 2, 32, 4>}, {transform_indices = @transform_1, window_bounds = array<i64: 1, 2, 16, 4>}, {pipeline_mode = #tpu.pipeline_mode<synchronous>, transform_indices = @transform_2, window_bounds = array<i64: 4, 256>}, {pipeline_mode = #tpu.pipeline_mode<synchronous>, transform_indices = @transform_3, window_bounds = array<i64: 1, 128>}, {transform_indices = @transform_4, window_bounds = array<i64: 2, 32, 128>}]} {
    %c0 = arith.constant 0 : index
    %c0_0 = arith.constant 0 : index
    %c0_1 = arith.constant 0 : index
    %0 = vector.load %arg1[%c0, %c0_0, %c0_1] : memref<2x32x4xf32, #tpu.memory_space<vmem>>, vector<2x32x4xf32>
    %1 = vector.shape_cast %0 : vector<2x32x4xf32> to vector<64x4xf32>
    %c0_2 = arith.constant 0 : index
    %c0_3 = arith.constant 0 : index
    %2 = vector.load %arg3[%c0_2, %c0_3] : memref<4x256xf32, #tpu.memory_space<vmem>>, vector<4x128xf32>
    %cst = arith.constant dense<0.000000e+00> : vector<64x128xf32>
    %3 = tpu.matmul %1, %2, %cst {dimension_numbers = #tpu.dot_dimension_numbers<[1], [0], [0], [1], [0, 0, 1, 1], [], []>} : vector<64x4xf32>, vector<4x128xf32>, vector<64x128xf32> -> vector<64x128xf32>
    %4 = vector.shape_cast %3 : vector<64x128xf32> to vector<2x32x128xf32>
    %c0_4 = arith.constant 0 : index
    %c0_5 = arith.constant 0 : index
    %c0_6 = arith.constant 0 : index
    %5 = vector.load %arg6[%c0_4, %c0_5, %c0_6] : memref<2x32x128xf32, #tpu.memory_space<vmem>>, vector<2x32x128xf32>
    tpu.vector_store %arg6[%c0_4, %c0_5, %c0_6], %4 {strides = array<i32>} : memref<2x32x128xf32, #tpu.memory_space<vmem>>, vector<2x32x128xf32>,
    %c0_7 = arith.constant 0 : index
    %c0_8 = arith.constant 0 : index
    %c0_9 = arith.constant 0 : index
    %c0_10 = arith.constant 0 : index
    %6 = vector.load %arg2[%c0_7, %c0_8, %c0_9, %c0_10] : memref<1x2x16x4xf32, #tpu.memory_space<vmem>>, vector<1x2x16x4xf32>
    %7 = vector.shape_cast %6 : vector<1x2x16x4xf32> to vector<2x16x4xf32>
    %8 = vector.shape_cast %7 : vector<2x16x4xf32> to vector<32x4xf32>
    %c0_11 = arith.constant 0 : index
    %c128 = arith.constant 128 : index
    %9 = vector.load %arg3[%c0_11, %c128] : memref<4x256xf32, #tpu.memory_space<vmem>>, vector<4x128xf32>
    %cst_12 = arith.constant dense<0.000000e+00> : vector<32x128xf32>
    %10 = tpu.matmul %8, %9, %cst_12 {dimension_numbers = #tpu.dot_dimension_numbers<[1], [0], [0], [1], [0, 0, 1, 1], [], []>} : vector<32x4xf32>, vector<4x128xf32>, vector<32x128xf32> -> vector<32x128xf32>
    %11 = vector.shape_cast %10 : vector<32x128xf32> to vector<2x16x128xf32>
    %c0_13 = arith.constant 0 : index
    %c128_14 = arith.constant 128 : index
    %12 = vector.load %arg3[%c0_13, %c128_14] : memref<4x256xf32, #tpu.memory_space<vmem>>, vector<4x128xf32>
    %cst_15 = arith.constant dense<0.000000e+00> : vector<64x128xf32>
    %13 = tpu.matmul %1, %12, %cst_15 {dimension_numbers = #tpu.dot_dimension_numbers<[1], [0], [0], [1], [0, 0, 1, 1], [], []>} : vector<64x4xf32>, vector<4x128xf32>, vector<64x128xf32> -> vector<64x128xf32>
    %14 = vector.shape_cast %13 : vector<64x128xf32> to vector<2x32x128xf32>
    %c0_16 = arith.constant 0 : index
    %c1 = arith.constant 1 : index
    %c0_17 = arith.constant 0 : index
    %15 = vector.load %arg6[%c0_16, %c1, %c0_17] : memref<2x32x128xf32, #tpu.memory_space<vmem>>, vector<2x31x128xf32>
    %16 = vector.extract_strided_slice %14 {offsets = [0, 0, 0], sizes = [2, 31, 128], strides = [1, 1, 1]} : vector<2x32x128xf32> to vector<2x31x128xf32>
    %17 = arith.addf %15, %16 : vector<2x31x128xf32>
    %c0_18 = arith.constant 0 : index
    %c1_19 = arith.constant 1 : index
    %c0_20 = arith.constant 0 : index
    %18 = vector.load %arg6[%c0_18, %c1_19, %c0_20] : memref<2x32x128xf32, #tpu.memory_space<vmem>>, vector<2x31x128xf32>
    tpu.vector_store %arg6[%c0_18, %c1_19, %c0_20], %17 {strides = array<i32>} : memref<2x32x128xf32, #tpu.memory_space<vmem>>, vector<2x31x128xf32>,
    %c0_21 = arith.constant 0 : index
    %c0_22 = arith.constant 0 : index
    %c0_23 = arith.constant 0 : index
    %19 = vector.load %arg6[%c0_21, %c0_22, %c0_23] : memref<2x32x128xf32, #tpu.memory_space<vmem>>, vector<2x1x128xf32>
    %20 = vector.extract_strided_slice %11 {offsets = [0, 15, 0], sizes = [2, 1, 128], strides = [1, 1, 1]} : vector<2x16x128xf32> to vector<2x1x128xf32>
    %21 = arith.addf %19, %20 : vector<2x1x128xf32>
    %c0_24 = arith.constant 0 : index
    %c0_25 = arith.constant 0 : index
    %c0_26 = arith.constant 0 : index
    %22 = vector.load %arg6[%c0_24, %c0_25, %c0_26] : memref<2x32x128xf32, #tpu.memory_space<vmem>>, vector<2x1x128xf32>
    tpu.vector_store %arg6[%c0_24, %c0_25, %c0_26], %21 {strides = array<i32>} : memref<2x32x128xf32, #tpu.memory_space<vmem>>, vector<2x1x128xf32>,
    %c0_27 = arith.constant 0 : index
    %c0_28 = arith.constant 0 : index
    %c0_29 = arith.constant 0 : index
    %23 = vector.load %arg6[%c0_27, %c0_28, %c0_29] : memref<2x32x128xf32, #tpu.memory_space<vmem>>, vector<2x32x128xf32>
    %c0_30 = arith.constant 0 : index
    %c0_31 = arith.constant 0 : index
    %24 = vector.load %arg4[%c0_30, %c0_31] : memref<1x128xf32, #tpu.memory_space<vmem>>, vector<1x128xf32>
    %25 = vector.shape_cast %24 : vector<1x128xf32> to vector<1x1x128xf32>
    %26 = vector.broadcast %25 : vector<1x1x128xf32> to vector<2x32x128xf32>
    %27 = arith.addf %23, %26 : vector<2x32x128xf32>
    %c0_32 = arith.constant 0 : index
    %c0_33 = arith.constant 0 : index
    %c0_34 = arith.constant 0 : index
    %28 = vector.load %arg5[%c0_32, %c0_33, %c0_34] : memref<2x32x128xf32, #tpu.memory_space<vmem>>, vector<2x32x128xf32>
    tpu.vector_store %arg5[%c0_32, %c0_33, %c0_34], %27 {strides = array<i32>} : memref<2x32x128xf32, #tpu.memory_space<vmem>>, vector<2x32x128xf32>,
    return
  }
  func.func @transform_0(%arg0: i32) -> (i32, i32, i32) {
    %c0_i32 = arith.constant 0 : i32
    %c0_i32_0 = arith.constant 0 : i32
    %c0_i32_1 = arith.constant 0 : i32
    return %c0_i32, %arg0, %c0_i32_0 : i32, i32, i32
  }
  func.func @transform_1(%arg0: i32) -> (i32, i32, i32, i32) {
    %c0_i32 = arith.constant 0 : i32
    %c0_i32_0 = arith.constant 0 : i32
    %c0_i32_1 = arith.constant 0 : i32
    %c0_i32_2 = arith.constant 0 : i32
    return %arg0, %c0_i32, %c0_i32_0, %c0_i32_1 : i32, i32, i32, i32
  }
  func.func @transform_2(%arg0: i32) -> (i32, i32) {
    %c0_i32 = arith.constant 0 : i32
    %c0_i32_0 = arith.constant 0 : i32
    %c0_i32_1 = arith.constant 0 : i32
    return %c0_i32, %c0_i32_0 : i32, i32
  }
  func.func @transform_3(%arg0: i32) -> (i32, i32) {
    %c0_i32 = arith.constant 0 : i32
    %c0_i32_0 = arith.constant 0 : i32
    %c0_i32_1 = arith.constant 0 : i32
    return %c0_i32, %c0_i32_0 : i32, i32
  }
  func.func @transform_4(%arg0: i32) -> (i32, i32, i32) {
    %c0_i32 = arith.constant 0 : i32
    %c0_i32_0 = arith.constant 0 : i32
    %c0_i32_1 = arith.constant 0 : i32
    return %c0_i32, %arg0, %c0_i32_0 : i32, i32, i32
  }
}

</mosaic_0001>

<llo_original>
// kernel: tpu_custom_call.1
$region0: #{tpu_custom_call.1}
  #allocation0 [shape = 'u32[]', space=smem, size = 0x4, offset = 0x4, fixed_abs, tag = 'smem constant byte address 0x4 - core index']
  #allocation1 [shape = 'u32[72,128]{1,0:T(1,128)}', space=vmem, size = 0x9000, scoped, tag = 'internal scratch']
  #allocation2 [shape = 'f32[2,32,128]{2,1,0:T(8,128)}', space=vmem, size = 0x8000, scoped, tag = 'scratch operand']
  %s0 = inlined_call_operand.vmem [shape: f32[2,32,4], index: 0, kind: input, shape index: {}]
  %s1 = inlined_call_operand.vmem [shape: f32[1,2,16,4], index: 1, kind: input, shape index: {}]
  %s2 = inlined_call_operand.vmem [shape: f32[4,256], index: 2, kind: input, shape index: {}]
  %s3 = inlined_call_operand.vmem [shape: f32[1,128], index: 3, kind: input, shape index: {}]
  %s4 = inlined_call_operand.hbm [shape: f32[2,32,128], index: 4, kind: output, shape index: {}]
  %s5 = sld [smem:[#allocation0]]
  $region26: #{tpu_custom_call.1} parent=0
    _
  %s7 = ssub.s32 1, %s5
  %s8 = scalar_select 0, %s7, %s5
  $region1: #{tpu_custom_call.1} parent=0
    #allocation3 [shape = 'u8[32768]{0}', space=vmem, size = 0x8000, scoped, tag = 'output window, operand 0, single buffered']
    #allocation4 [shape = 's32[1]{0}', space=sflag, size = 0x4, scoped, tag = 'scoped memory for tpu_custom_call.1']
    %9 = vsyncpa [#allocation4], 0
    // Predicated region
    $region2: #{tpu_custom_call.1} parent=1 // pred_check
      _
    $region3: #{tpu_custom_call.1} parent=1 // pred_check_branch
      %11 = sbr.rel (0) target = $region5
    $region4: #{tpu_custom_call.1} parent=1 // pred_region
      _
    $region5: #{tpu_custom_call.1} parent=1 // pred_fallthru
      _
    // Predicated region
    $region6: #{tpu_custom_call.1} parent=1 // pred_check
      _
    $region7: #{tpu_custom_call.1} parent=1 // pred_check_branch
      %13 = sbr.rel (0) target = $region9
    $region8: #{tpu_custom_call.1} parent=1 // pred_region
      _
    $region9: #{tpu_custom_call.1} parent=1 // pred_fallthru
      _
    // Predicated region
    $region10: #{tpu_custom_call.1} parent=1 // pred_check
      _
    $region11: #{tpu_custom_call.1} parent=1 // pred_check_branch
      %15 = sbr.rel (0) target = $region13
    $region12: #{tpu_custom_call.1} parent=1 // pred_region
      _
    $region13: #{tpu_custom_call.1} parent=1 // pred_fallthru
      _
    // Predicated region
    $region14: #{tpu_custom_call.1} parent=1 // pred_check
      _
    $region15: #{tpu_custom_call.1} parent=1 // pred_check_branch
      %17 = sbr.rel (0) target = $region17
    $region16: #{tpu_custom_call.1} parent=1 // pred_region
      _
    $region17: #{tpu_custom_call.1} parent=1 // pred_fallthru
      _
    %v18 = vld [vmem:[%s0] sm:$0xff]
    %v19 = vld [vmem:[%s0 + $0x8] sm:$0xff]
    %v20 = vld [vmem:[%s0 + $0x10] sm:$0xff]
    %v21 = vld [vmem:[%s0 + $0x18] sm:$0xff]
    %v22 = vld [vmem:[%s0 + $0x20] sm:$0xff]
    %v23 = vld [vmem:[%s0 + $0x28] sm:$0xff]
    %v24 = vld [vmem:[%s0 + $0x30] sm:$0xff]
    %v25 = vld [vmem:[%s0 + $0x38] sm:$0xff]
    %v26 = vld [vmem:[%s2] sm:$0xf]
    %vm27 = vcmask 31744
    %v29 = vsel %vm27, %v18, 0
    %v32 = vsel %vm27, %v19, 0
    %v35 = vsel %vm27, %v20, 0
    %v38 = vsel %vm27, %v21, 0
    %v41 = vsel %vm27, %v22, 0
    %v44 = vsel %vm27, %v23, 0
    %v47 = vsel %vm27, %v24, 0
    %v50 = vsel %vm27, %v25, 0
    %vm52 = vcmask 1043456
    %v54 = vsel %vm52, %v26, 0
    %56 = vmatpush.msra.mxu0 0.0
    %57 = vmatpush.msra.mxu0 0.0
    %58 = vmatpush.msra.mxu0 0.0
    %59 = vmatpush.msra.mxu0 0.0
    %60 = vmatpush.msra.mxu0 0.0
    %61 = vmatpush.msra.mxu0 0.0
    %62 = vmatpush.msra.mxu0 0.0
    %63 = vmatpush.msra.mxu0 0.0
    %64 = vmatpush.msra.mxu0 0.0
    %65 = vmatpush.msra.mxu0 0.0
    %66 = vmatpush.msra.mxu0 0.0
    %67 = vmatpush.msra.mxu0 0.0
    %68 = vmatpush.msra.mxu0 0.0
    %69 = vmatpush.msra.mxu0 0.0
    %70 = vmatpush.msra.mxu0 0.0
    %71 = vmatpush.msra.mxu0 %v54
    %72 = vmatmul.f32.gmra.mxu0 %v29
    %v73 = vpop.f32.mrf.mxu0
    %v74 = vadd.f32 0.0, %v73
    %75 = vmatmul.f32.gmra.mxu0 %v32
    %v76 = vpop.f32.mrf.mxu0
    %v77 = vadd.f32 0.0, %v76
    %78 = vmatmul.f32.gmra.mxu0 %v35
    %v79 = vpop.f32.mrf.mxu0
    %v80 = vadd.f32 0.0, %v79
    %81 = vmatmul.f32.gmra.mxu0 %v38
    %v82 = vpop.f32.mrf.mxu0
    %v83 = vadd.f32 0.0, %v82
    %84 = vmatmul.f32.gmra.mxu0 %v41
    %v85 = vpop.f32.mrf.mxu0
    %v86 = vadd.f32 0.0, %v85
    %87 = vmatmul.f32.gmra.mxu0 %v44
    %v88 = vpop.f32.mrf.mxu0
    %v89 = vadd.f32 0.0, %v88
    %90 = vmatmul.f32.gmra.mxu0 %v47
    %v91 = vpop.f32.mrf.mxu0
    %v92 = vadd.f32 0.0, %v91
    %93 = vmatmul.f32.gmra.mxu0 %v50
    %v94 = vpop.f32.mrf.mxu0
    %v95 = vadd.f32 0.0, %v94
    %96 = vdwg.mxu0
    %97 = vst [vmem:[#allocation2] sm:$0xff] %v74
    %98 = vst [vmem:[#allocation2 + $0x8] sm:$0xff] %v77
    %99 = vst [vmem:[#allocation2 + $0x10] sm:$0xff] %v80
    %100 = vst [vmem:[#allocation2 + $0x18] sm:$0xff] %v83
    %101 = vst [vmem:[#allocation2 + $0x20] sm:$0xff] %v86
    %102 = vst [vmem:[#allocation2 + $0x28] sm:$0xff] %v89
    %103 = vst [vmem:[#allocation2 + $0x30] sm:$0xff] %v92
    %104 = vst [vmem:[#allocation2 + $0x38] sm:$0xff] %v95
    %v105 = vld [vmem:[%s1] sm:$0xff]
    %v106 = vld [vmem:[%s1 + $0x8] sm:$0xff]
    %v107 = vld [vmem:[%s1 + $0x10] sm:$0xff]
    %v108 = vld [vmem:[%s1 + $0x18] sm:$0xff]
    %v109 = vld [vmem:[%s2 + $0x4] sm:$0xf]
    %v111 = vsel %vm27, %v105, 0
    %v114 = vsel %vm27, %v106, 0
    %v117 = vsel %vm27, %v107, 0
    %v120 = vsel %vm27, %v108, 0
    %v123 = vsel %vm52, %v109, 0
    %125 = vmatpush.msra.mxu0 0.0
    %126 = vmatpush.msra.mxu0 0.0
    %127 = vmatpush.msra.mxu0 0.0
    %128 = vmatpush.msra.mxu0 0.0
    %129 = vmatpush.msra.mxu0 0.0
    %130 = vmatpush.msra.mxu0 0.0
    %131 = vmatpush.msra.mxu0 0.0
    %132 = vmatpush.msra.mxu0 0.0
    %133 = vmatpush.msra.mxu0 0.0
    %134 = vmatpush.msra.mxu0 0.0
    %135 = vmatpush.msra.mxu0 0.0
    %136 = vmatpush.msra.mxu0 0.0
    %137 = vmatpush.msra.mxu0 0.0
    %138 = vmatpush.msra.mxu0 0.0
    %139 = vmatpush.msra.mxu0 0.0
    %140 = vmatpush.msra.mxu0 %v123
    %141 = vmatmul.f32.gmra.mxu0 %v111
    %v142 = vpop.f32.mrf.mxu0
    %143 = vmatmul.f32.gmra.mxu0 %v114
    %v144 = vpop.f32.mrf.mxu0
    %v145 = vadd.f32 0.0, %v144
    %146 = vmatmul.f32.gmra.mxu0 %v117
    %v147 = vpop.f32.mrf.mxu0
    %148 = vmatmul.f32.gmra.mxu0 %v120
    %v149 = vpop.f32.mrf.mxu0
    %v150 = vadd.f32 0.0, %v149
    %151 = vdwg.mxu0
    %152 = vmatpush.msra.mxu0 0.0
    %153 = vmatpush.msra.mxu0 0.0
    %154 = vmatpush.msra.mxu0 0.0
    %155 = vmatpush.msra.mxu0 0.0
    %156 = vmatpush.msra.mxu0 0.0
    %157 = vmatpush.msra.mxu0 0.0
    %158 = vmatpush.msra.mxu0 0.0
    %159 = vmatpush.msra.mxu0 0.0
    %160 = vmatpush.msra.mxu0 0.0
    %161 = vmatpush.msra.mxu0 0.0
    %162 = vmatpush.msra.mxu0 0.0
    %163 = vmatpush.msra.mxu0 0.0
    %164 = vmatpush.msra.mxu0 0.0
    %165 = vmatpush.msra.mxu0 0.0
    %166 = vmatpush.msra.mxu0 0.0
    %167 = vmatpush.msra.mxu0 %v123
    %168 = vmatmul.f32.gmra.mxu0 %v29
    %v169 = vpop.f32.mrf.mxu0
    %v170 = vadd.f32 0.0, %v169
    %171 = vmatmul.f32.gmra.mxu0 %v32
    %v172 = vpop.f32.mrf.mxu0
    %v173 = vadd.f32 0.0, %v172
    %174 = vmatmul.f32.gmra.mxu0 %v35
    %v175 = vpop.f32.mrf.mxu0
    %v176 = vadd.f32 0.0, %v175
    %177 = vmatmul.f32.gmra.mxu0 %v38
    %v178 = vpop.f32.mrf.mxu0
    %v179 = vadd.f32 0.0, %v178
    %180 = vmatmul.f32.gmra.mxu0 %v41
    %v181 = vpop.f32.mrf.mxu0
    %v182 = vadd.f32 0.0, %v181
    %183 = vmatmul.f32.gmra.mxu0 %v44
    %v184 = vpop.f32.mrf.mxu0
    %v185 = vadd.f32 0.0, %v184
    %186 = vmatmul.f32.gmra.mxu0 %v47
    %v187 = vpop.f32.mrf.mxu0
    %v188 = vadd.f32 0.0, %v187
    %189 = vmatmul.f32.gmra.mxu0 %v50
    %v190 = vpop.f32.mrf.mxu0
    %v191 = vadd.f32 0.0, %v190
    %192 = vdwg.mxu0
    %v193 = vld [vmem:[#allocation2 + $0x1] sm:$0xff]
    %v194 = vld [vmem:[#allocation2 + $0x9] sm:$0xff]
    %v195 = vld [vmem:[#allocation2 + $0x11] sm:$0xff]
    %v196 = vld [vmem:[#allocation2 + $0x19] sm:$0x7f]
    %v197 = vld [vmem:[#allocation2 + $0x21] sm:$0xff]
    %v198 = vld [vmem:[#allocation2 + $0x29] sm:$0xff]
    %v199 = vld [vmem:[#allocation2 + $0x31] sm:$0xff]
    %v200 = vld [vmem:[#allocation2 + $0x39] sm:$0x7f]
    %v201 = vadd.f32 %v193, %v170
    %v202 = vadd.f32 %v194, %v173
    %v203 = vadd.f32 %v195, %v176
    %v204 = vadd.f32 %v196, %v179
    %v205 = vadd.f32 %v197, %v182
    %v206 = vadd.f32 %v198, %v185
    %v207 = vadd.f32 %v199, %v188
    %v208 = vadd.f32 %v200, %v191
    %209 = vst [vmem:[#allocation2 + $0x1] sm:$0xff] %v201
    %210 = vst [vmem:[#allocation2 + $0x9] sm:$0xff] %v202
    %211 = vst [vmem:[#allocation2 + $0x11] sm:$0xff] %v203
    %212 = vst [vmem:[#allocation2 + $0x19] sm:$0x7f] %v204
    %213 = vst [vmem:[#allocation2 + $0x21] sm:$0xff] %v205
    %214 = vst [vmem:[#allocation2 + $0x29] sm:$0xff] %v206
    %215 = vst [vmem:[#allocation2 + $0x31] sm:$0xff] %v207
    %216 = vst [vmem:[#allocation2 + $0x39] sm:$0x7f] %v208
    %v217 = vld [vmem:[#allocation2] sm:$0x1]
    %v218 = vld [vmem:[#allocation2 + $0x20] sm:$0x1]
    %v221 = vrot.slane %v145, 7
    %v222 = vrot.slane %v150, 7
    %v225 = vadd.f32 %v217, %v221
    %v226 = vadd.f32 %v218, %v222
    %227 = vst [vmem:[#allocation2] sm:$0x1] %v225
    %228 = vst [vmem:[#allocation2 + $0x20] sm:$0x1] %v226
    %v229 = vld [vmem:[#allocation2] sm:$0xff]
    %v230 = vld [vmem:[#allocation2 + $0x8] sm:$0xff]
    %v231 = vld [vmem:[#allocation2 + $0x10] sm:$0xff]
    %v232 = vld [vmem:[#allocation2 + $0x18] sm:$0xff]
    %v233 = vld [vmem:[#allocation2 + $0x20] sm:$0xff]
    %v234 = vld [vmem:[#allocation2 + $0x28] sm:$0xff]
    %v235 = vld [vmem:[#allocation2 + $0x30] sm:$0xff]
    %v236 = vld [vmem:[#allocation2 + $0x38] sm:$0xff]
    %v237 = vld [vmem:[%s3] sm:$0x1]
    %v239 = vperm.slane %v237, 0
    %v241 = vadd.f32 %v229, %v239
    %v242 = vadd.f32 %v230, %v239
    %v243 = vadd.f32 %v231, %v239
    %v244 = vadd.f32 %v232, %v239
    %v245 = vadd.f32 %v233, %v239
    %v246 = vadd.f32 %v234, %v239
    %v247 = vadd.f32 %v235, %v239
    %v248 = vadd.f32 %v236, %v239
    %249 = vst [vmem:[#allocation3] sm:$0xff] %v241
    %250 = vst [vmem:[#allocation3 + $0x8] sm:$0xff] %v242
    %251 = vst [vmem:[#allocation3 + $0x10] sm:$0xff] %v243
    %252 = vst [vmem:[#allocation3 + $0x18] sm:$0xff] %v244
    %253 = vst [vmem:[#allocation3 + $0x20] sm:$0xff] %v245
    %254 = vst [vmem:[#allocation3 + $0x28] sm:$0xff] %v246
    %255 = vst [vmem:[#allocation3 + $0x30] sm:$0xff] %v247
    %256 = vst [vmem:[#allocation3 + $0x38] sm:$0xff] %v248
    // Predicated region
    $region18: #{tpu_custom_call.1} parent=1 // pred_check
      _
    $region19: #{tpu_custom_call.1} parent=1 // pred_check_branch
      %258 = sbr.rel (0) target = $region21
    $region20: #{tpu_custom_call.1} parent=1 // pred_region
      %260 = vsyncadd [#allocation4], 0
      %s261 = sshll.u32 [#allocation3], 4
      %s262 = int_to_ptr.vmem [resolvable:$true] %s261
      %s263 = sshll.u32 %s4, 4
      %s264 = int_to_ptr.hbm [resolvable:$true] %s263
      %269 = dma.vmem_to_hbm [thread:$0]  %s262, 1024, %s264, [#allocation4], 128, 128, 8
    $region21: #{tpu_custom_call.1} parent=1 // pred_fallthru
      _
    // Predicated region
    $region22: #{tpu_custom_call.1} parent=1 // pred_check
      _
    $region23: #{tpu_custom_call.1} parent=1 // pred_check_branch
      %271 = sbr.rel (0) target = $region25
    $region24: #{tpu_custom_call.1} parent=1 // pred_region
      %273 = dma.done [#allocation4], 1024
    $region25: #{tpu_custom_call.1} parent=1 // pred_fallthru
      _
    %274 = vsyncpa [#allocation4], 1

</llo_original>
